<compile_context>
chip_gen: v5e
topology: v5e:2x2
jax: 0.10.0
libtpu: 0.0.40
codegen_flags: <defaults>
</compile_context>

<pallas_src>
import jax
import jax.numpy as jnp
from jax.experimental import pallas as pl
from jax.experimental.pallas import tpu as pltpu


def _make_pool_kernel(W: int, W_out: int, k: int):
    """Kernel over a (mt, k*W) input block and a (mt, W_out) output block."""

    def kernel(x_ref, o_ref):
        v = x_ref[...]                                      # (mt, k*W), input dtype
        # Vertical max over the k window rows: contiguous lane slices -> VPU.
        y = v[:, :W]
        for r in range(1, k):
            y = jnp.maximum(y, v[:, r * W:(r + 1) * W])     # (mt, W)
        # Horizontal stride-k decimation: tiny in-kernel one-hot matrices pick
        # each lane phase exactly (MXU), then a VPU max across the k phases.
        rows = jax.lax.broadcasted_iota(jnp.int32, (W, W_out), 0)
        cols = jax.lax.broadcasted_iota(jnp.int32, (W, W_out), 1)
        acc = None
        for rw in range(k):
            sel = (rows == k * cols + rw).astype(v.dtype)   # (W, W_out) one-hot
            p = jnp.dot(y, sel, preferred_element_type=jnp.float32)
            acc = p if acc is None else jnp.maximum(acc, p)
        o_ref[...] = acc.astype(o_ref.dtype)

    return kernel


def quaternion_max_pool(x, kernel_size: int = 2, stride: int = 2, padding: int = 0):
    """Matches QuaternionMaxPool.forward for a (B, C, 4, H, W) input."""
    B, C, Q, H, W = x.shape
    assert Q == 4, "Expected quaternion format with 4 components"
    assert padding == 0, "only padding=0 implemented"
    k = kernel_size
    assert stride == k, "only stride == kernel_size implemented"
    assert H % k == 0 and W % k == 0, "H, W must be divisible by kernel_size"

    H_out, W_out = H // k, W // k
    M = B * C * Q * H_out          # one output row per (plane, output-row) pair
    kW = k * W                     # one input row = k consecutive image rows
    itemsize = jnp.dtype(x.dtype).itemsize

    # Free, row-major reshape: (B,C,Q,H,W) -> (M, k*W); every grid step DMAs
    # one fully contiguous HBM slab.
    xw = x.reshape(M, kW)

    # Block rows from a kW-aware VMEM byte budget (double-buffered input slab),
    # capped at 1024 rows and so that the grid has >= 8 steps when M allows it.
    budget = 6 * 1024 * 1024
    mt = budget // (kW * itemsize * 2)
    mt = min(mt, 1024)
    mt = min(mt, max(8, (M // 8) // 8 * 8))   # keep >= ~8 grid steps
    mt = max(8, (mt // 8) * 8)                # sublane-aligned block rows
    grid = (pl.cdiv(M, mt),)

    out = pl.pallas_call(
        _make_pool_kernel(W, W_out, k),
        out_shape=jax.ShapeDtypeStruct((M, W_out), x.dtype),
        grid=grid,
        in_specs=[pl.BlockSpec((mt, kW), lambda i: (i, 0))],
        out_specs=pl.BlockSpec((mt, W_out), lambda i: (i, 0)),
        compiler_params=pltpu.CompilerParams(
            dimension_semantics=("parallel",),   # shard grid across v7x's 2 TCs
        ),
    )(xw)

    return out.reshape(B, C, Q, H_out, W_out)


if __name__ == "__main__":
    key = jax.random.PRNGKey(0)
    B, C, Q, H, W = 2, 4, 4, 16, 16
    x = jax.random.normal(key, (B, C, Q, H, W), dtype=jnp.float32)

    out = quaternion_max_pool(x, kernel_size=2, stride=2, padding=0)
    out = jax.block_until_ready(out)

    # Pure-JAX reference (same semantics as the PyTorch module).
    ref = jnp.max(x.reshape(B, C, Q, H // 2, 2, W // 2, 2), axis=(4, 6))

    assert out.shape == (B, C, Q, H // 2, W // 2), out.shape
    assert out.dtype == x.dtype
    assert jnp.allclose(out, ref), "mismatch vs reference max-pool"

    print("KERNEL_OK")
</pallas_src>

<mosaic_0001>
module attributes {stable_mosaic.version = 11 : i64} {
  func.func @kernel(%arg0: i32, %arg1: memref<32x32xf32, #tpu.memory_space<vmem>>, %arg2: memref<32x8xf32, #tpu.memory_space<vmem>>) attributes {dimension_semantics = [#tpu.dimension_semantics<parallel>], iteration_bounds = array<i64: 8>, scalar_prefetch = 0 : i64, scratch_operands = 0 : i64, tpu.core_type = #tpu.core_type<tc>, window_params = [{transform_indices = @transform_0, window_bounds = array<i64: 32, 32>}, {transform_indices = @transform_1, window_bounds = array<i64: 32, 8>}]} {
    %c0 = arith.constant 0 : index
    %c0_0 = arith.constant 0 : index
    %0 = vector.load %arg1[%c0, %c0_0] : memref<32x32xf32, #tpu.memory_space<vmem>>, vector<32x32xf32>
    %1 = vector.extract_strided_slice %0 {offsets = [0, 0], sizes = [32, 16], strides = [1, 1]} : vector<32x32xf32> to vector<32x16xf32>
    %2 = vector.extract_strided_slice %0 {offsets = [0, 16], sizes = [32, 16], strides = [1, 1]} : vector<32x32xf32> to vector<32x16xf32>
    %3 = arith.maximumf %1, %2 : vector<32x16xf32>
    %4 = tpu.iota {dimensions = array<i32: 0>} : vector<16x8xi32>
    %5 = tpu.iota {dimensions = array<i32: 1>} : vector<16x8xi32>
    %c2_i32 = arith.constant 2 : i32
    %6 = vector.broadcast %c2_i32 : i32 to vector<16x8xi32>
    %7 = arith.muli %6, %5 : vector<16x8xi32>
    %c0_i32 = arith.constant 0 : i32
    %8 = vector.broadcast %c0_i32 : i32 to vector<16x8xi32>
    %9 = arith.addi %7, %8 : vector<16x8xi32>
    %10 = arith.cmpi eq, %4, %9 : vector<16x8xi32>
    %11 = arith.extui %10 : vector<16x8xi1> to vector<16x8xi32>
    %12 = arith.sitofp %11 : vector<16x8xi32> to vector<16x8xf32>
    %cst = arith.constant dense<0.000000e+00> : vector<32x8xf32>
    %13 = tpu.matmul %3, %12, %cst {dimension_numbers = #tpu.dot_dimension_numbers<[1], [0], [0], [1], [0, 0, 1, 1], [], []>} : vector<32x16xf32>, vector<16x8xf32>, vector<32x8xf32> -> vector<32x8xf32>
    %c2_i32_1 = arith.constant 2 : i32
    %14 = vector.broadcast %c2_i32_1 : i32 to vector<16x8xi32>
    %15 = arith.muli %14, %5 : vector<16x8xi32>
    %c1_i32 = arith.constant 1 : i32
    %16 = vector.broadcast %c1_i32 : i32 to vector<16x8xi32>
    %17 = arith.addi %15, %16 : vector<16x8xi32>
    %18 = arith.cmpi eq, %4, %17 : vector<16x8xi32>
    %19 = arith.extui %18 : vector<16x8xi1> to vector<16x8xi32>
    %20 = arith.sitofp %19 : vector<16x8xi32> to vector<16x8xf32>
    %cst_2 = arith.constant dense<0.000000e+00> : vector<32x8xf32>
    %21 = tpu.matmul %3, %20, %cst_2 {dimension_numbers = #tpu.dot_dimension_numbers<[1], [0], [0], [1], [0, 0, 1, 1], [], []>} : vector<32x16xf32>, vector<16x8xf32>, vector<32x8xf32> -> vector<32x8xf32>
    %22 = arith.maximumf %13, %21 : vector<32x8xf32>
    %c0_3 = arith.constant 0 : index
    %c0_4 = arith.constant 0 : index
    %23 = vector.load %arg2[%c0_3, %c0_4] : memref<32x8xf32, #tpu.memory_space<vmem>>, vector<32x8xf32>
    tpu.vector_store %arg2[%c0_3, %c0_4], %22 {strides = array<i32>} : memref<32x8xf32, #tpu.memory_space<vmem>>, vector<32x8xf32>,
    return
  }
  func.func @transform_0(%arg0: i32) -> (i32, i32) {
    %c0_i32 = arith.constant 0 : i32
    %c0_i32_0 = arith.constant 0 : i32
    return %arg0, %c0_i32 : i32, i32
  }
  func.func @transform_1(%arg0: i32) -> (i32, i32) {
    %c0_i32 = arith.constant 0 : i32
    %c0_i32_0 = arith.constant 0 : i32
    return %arg0, %c0_i32 : i32, i32
  }
}

</mosaic_0001>

<llo_original>
// kernel: tpu_custom_call.1
$region0: #{tpu_custom_call.1}
  #allocation0 [shape = 'u32[]', space=smem, size = 0x4, offset = 0x4, fixed_abs, tag = 'smem constant byte address 0x4 - core index']
  #allocation1 [shape = 'u32[72,128]{1,0:T(1,128)}', space=vmem, size = 0x9000, scoped, tag = 'internal scratch']
  %s0 = inlined_call_operand.vmem [shape: f32[256,32], index: 0, kind: input, shape index: {}]
  %s1 = inlined_call_operand.vmem [shape: f32[256,8], index: 1, kind: output, shape index: {}]
  %s2 = sld [smem:[#allocation0]]
  $region37: #{tpu_custom_call.1} parent=0
    _
  %s4 = ssub.s32 1, %s2
  %s5 = scalar_select 0, %s4, %s2
  loop: start=0, step=1, limit=10
  $region2: #{tpu_custom_call.1} parent=0 // loop_pre_header
    _
  $region3: #{tpu_custom_call.1} parent=0 // loop_header
    %s7 = sphi 0, %s11
    %p8 = scmp.ge.s32.totalorder %s7, 10
    %s17 = sphi 0, %s19
    %s20 = sphi 0, %s17
    %s21 = sphi 0, %s20
    %s37 = sphi 0, %s21
    %s43 = sphi 0, %s45
    %s46 = sphi 0, %s43
    %s47 = sphi 0, %s46
    %s63 = sphi 0, %s47
  $region4: #{tpu_custom_call.1} parent=0 // loop_header_branch
    %10 = sbr.rel (%p8) target = $region8
  $region5: #{tpu_custom_call.1} parent=0 // loop_body
    %s12 = ssub.s32 %s7, 1
    %s13 = ssub.s32 %s7, 2
    %s14 = sadd.s32 %s7, 1
    %s15 = ssub.s32 %s7, %s14
    %p16 = scmp.eq.s32.totalorder %s15, 0
    %s18 = sadd.s32 %s17, 1
    %s19 = scalar_select %p16, %s17, %s18
    %p22 = pneg %p16
    %p23 = scmp.eq.s32.totalorder %s7, 7
    %p24 = por %p22, %p23
    %p25 = scmp.ne.s32.totalorder %s17, %s20
    %p26 = scmp.eq.s32.totalorder %s7, 0
    %p27 = por %p25, %p26
    %p28 = scmp.ne.s32.totalorder %s17, %s20
    %p29 = scmp.eq.s32.totalorder %s12, 7
    %p30 = por %p28, %p29
    %p31 = scmp.ne.s32.totalorder %s20, %s21
    %p32 = scmp.eq.s32.totalorder %s12, 0
    %p33 = por %p31, %p32
    %p34 = scmp.ne.s32.totalorder %s20, %s21
    %p35 = scmp.eq.s32.totalorder %s13, 7
    %p36 = por %p34, %p35
    %p38 = scmp.ne.s32.totalorder %s21, %s37
    %p39 = scmp.eq.s32.totalorder %s13, 0
    %p40 = por %p38, %p39
    %s41 = ssub.s32 %s7, %s14
    %p42 = scmp.eq.s32.totalorder %s41, 0
    %s44 = sadd.s32 %s43, 1
    %s45 = scalar_select %p42, %s43, %s44
    %p48 = pneg %p42
    %p49 = scmp.eq.s32.totalorder %s7, 7
    %p50 = por %p48, %p49
    %p51 = scmp.ne.s32.totalorder %s43, %s46
    %p52 = scmp.eq.s32.totalorder %s7, 0
    %p53 = por %p51, %p52
    %p54 = scmp.ne.s32.totalorder %s43, %s46
    %p55 = scmp.eq.s32.totalorder %s12, 7
    %p56 = por %p54, %p55
    %p57 = scmp.ne.s32.totalorder %s46, %s47
    %p58 = scmp.eq.s32.totalorder %s12, 0
    %p59 = por %p57, %p58
    %p60 = scmp.ne.s32.totalorder %s46, %s47
    %p61 = scmp.eq.s32.totalorder %s13, 7
    %p62 = por %p60, %p61
    %p64 = scmp.ne.s32.totalorder %s47, %s63
    %p65 = scmp.eq.s32.totalorder %s13, 0
    %p66 = por %p64, %p65
    %p67 = scmp.le.s32.totalorder 1, %s7
    %p68 = scmp.lt.s32.totalorder %s7, 9
    %p69 = pnand %p67, %p68
    %p70 = pneg %p69
    // Predicated region
    $region9: #{tpu_custom_call.1} parent=5 // pred_check
      _
    $region10: #{tpu_custom_call.1} parent=5 // pred_check_branch
      %72 = sbr.rel (%p69) target = $region12
    $region11: #{tpu_custom_call.1} parent=5 // pred_region
      %s73 = ssub.s32 %s7, 1
    $region12: #{tpu_custom_call.1} parent=5 // pred_fallthru
      _
    %p74 = scmp.lt.s32.totalorder %s7, 8
    // Predicated region
    $region13: #{tpu_custom_call.1} parent=5 // pred_check
      %p75 = pneg %p74
    $region14: #{tpu_custom_call.1} parent=5 // pred_check_branch
      %77 = sbr.rel (%p75) target = $region16
    $region15: #{tpu_custom_call.1} parent=5 // pred_region
      // Predicated region
      $region17: #{tpu_custom_call.1} parent=15 // pred_check
        %p78 = pneg %p27
      $region18: #{tpu_custom_call.1} parent=15 // pred_check_branch
        %80 = sbr.rel (%p78) target = $region20
      $region19: #{tpu_custom_call.1} parent=15 // pred_region
        %s81 = smul.u32 4, %s7
        %p82 = scmp.lt.s32.totalorder %s81, 31
        %s83 = scalar_select %p82, %s81, 31
        %s84 = smul.addr %s83, 8
        %s85 = scalar_lea.vmem %s0, %s84
        %s86 = smul.u32 4, %s7
      $region20: #{tpu_custom_call.1} parent=15 // pred_fallthru
        _
    $region16: #{tpu_custom_call.1} parent=5 // pred_fallthru
      _
    %p87 = scmp.le.s32.totalorder 1, %s7
    %p88 = scmp.lt.s32.totalorder %s7, 9
    %p89 = pnand %p87, %p88
    %p90 = pneg %p89
    // Predicated region
    $region21: #{tpu_custom_call.1} parent=5 // pred_check
      _
    $region22: #{tpu_custom_call.1} parent=5 // pred_check_branch
      %92 = sbr.rel (%p89) target = $region24
    $region23: #{tpu_custom_call.1} parent=5 // pred_region
      %s93 = ssub.s32 %s7, 1
      %s94 = smul.u32 4, %s12
      %p95 = scmp.lt.s32.totalorder %s94, 31
      %s96 = scalar_select %p95, %s94, 31
      %s97 = smul.addr %s96, 8
      %s98 = scalar_lea.vmem %s0, %s97
      %p99 = pneg %p33
      %p100 = pneg %p30
      %p101 = pneg %p59
      %p102 = pneg %p56
      %s103 = smul.u32 4, %s12
      %p104 = scmp.lt.s32.totalorder %s103, 31
      %s105 = scalar_select %p104, %s103, 31
      %s106 = smul.addr %s105, 8
      %s107 = scalar_lea.vmem %s1, %s106
      %s108 = smul.u32 4, %s12
      %p109 = scmp.lt.s32.totalorder %s108, 31
      %s110 = scalar_select %p109, %s108, 31
      %s111 = smul.addr %s110, 8
      %s112 = scalar_lea.vmem %s0, %s111
      %s113 = smul.u32 4, %s12
      %s114 = smul.u32 4, %s12
      %p115 = scmp.lt.s32.totalorder %s114, 31
      %s116 = scalar_select %p115, %s114, 31
      %s117 = smul.addr %s116, 8
      %s118 = scalar_lea.vmem %s1, %s117
      %s119 = smul.u32 4, %s12
      %v120 = vld [vmem:[%s112] sm:$0xff]
      %v121 = vld [vmem:[%s112 + $0x8] sm:$0xff]
      %v122 = vld [vmem:[%s112 + $0x10] sm:$0xff]
      %v123 = vld [vmem:[%s112 + $0x18] sm:$0xff]
      %128 = vrot.lane.b32.xlu0 %v120, 112
      %v129 = vpop.permute.xlu0 %128
      %130 = vrot.lane.b32.xlu0 %v121, 112
      %v131 = vpop.permute.xlu0 %130
      %132 = vrot.lane.b32.xlu0 %v122, 112
      %v133 = vpop.permute.xlu0 %132
      %134 = vrot.lane.b32.xlu0 %v123, 112
      %v135 = vpop.permute.xlu0 %134
      %v140 = vmax.f32 %v120, %v129
      %v141 = vmax.f32 %v121, %v131
      %v142 = vmax.f32 %v122, %v133
      %v143 = vmax.f32 %v123, %v135
      %v144 = vlaneseq
      %v145 = vshrl.u32 %v144, 7
      %v146 = vadd.s32 %v145, 8
      %v147 = vlaneseq
      %v148 = vand.u32 %v147, 127
      %v149 = vmul.u32 %v148, 2
      %vm150 = vcmp.eq.s32.totalorder %v145, %v149
      %vm151 = vcmp.eq.s32.totalorder %v146, %v149
      %v152 = vsel %vm150, 1, 0
      %v153 = vsel %vm151, 1, 0
      %v154 = vcvt.s32.f32 %v152
      %v155 = vcvt.s32.f32 %v153
      %vm156 = vcmask 130048
      %v158 = vsel %vm156, %v140, 0
      %v161 = vsel %vm156, %v141, 0
      %v164 = vsel %vm156, %v142, 0
      %v167 = vsel %vm156, %v143, 0
      %169 = vmatpush.msra.mxu0 0.0
      %170 = vmatpush.msra.mxu0 0.0
      %171 = vmatpush.msra.mxu0 0.0
      %172 = vmatpush.msra.mxu0 0.0
      %173 = vmatpush.msra.mxu0 0.0
      %174 = vmatpush.msra.mxu0 0.0
      %175 = vmatpush.msra.mxu0 0.0
      %176 = vmatpush.msra.mxu0 0.0
      %177 = vmatpush.msra.mxu0 0.0
      %178 = vmatpush.msra.mxu0 0.0
      %179 = vmatpush.msra.mxu0 0.0
      %180 = vmatpush.msra.mxu0 0.0
      %181 = vmatpush.msra.mxu0 0.0
      %182 = vmatpush.msra.mxu0 0.0
      %183 = vmatpush.msra.mxu0 %v155
      %184 = vmatpush.msra.mxu0 %v154
      %185 = vmatmul.f32.gmra.mxu0 %v158
      %v186 = vpop.f32.mrf.mxu0
      %v187 = vadd.f32 0.0, %v186
      %188 = vmatmul.f32.gmra.mxu0 %v161
      %v189 = vpop.f32.mrf.mxu0
      %v190 = vadd.f32 0.0, %v189
      %191 = vmatmul.f32.gmra.mxu0 %v164
      %v192 = vpop.f32.mrf.mxu0
      %v193 = vadd.f32 0.0, %v192
      %194 = vmatmul.f32.gmra.mxu0 %v167
      %v195 = vpop.f32.mrf.mxu0
      %v196 = vadd.f32 0.0, %v195
      %197 = vdwg.mxu0
      %v198 = vadd.s32 %v149, 1
      %vm199 = vcmp.eq.s32.totalorder %v145, %v198
      %vm200 = vcmp.eq.s32.totalorder %v146, %v198
      %v201 = vsel %vm199, 1, 0
      %v202 = vsel %vm200, 1, 0
      %v203 = vcvt.s32.f32 %v201
      %v204 = vcvt.s32.f32 %v202
      %205 = vmatpush.msra.mxu0 0.0
      %206 = vmatpush.msra.mxu0 0.0
      %207 = vmatpush.msra.mxu0 0.0
      %208 = vmatpush.msra.mxu0 0.0
      %209 = vmatpush.msra.mxu0 0.0
      %210 = vmatpush.msra.mxu0 0.0
      %211 = vmatpush.msra.mxu0 0.0
      %212 = vmatpush.msra.mxu0 0.0
      %213 = vmatpush.msra.mxu0 0.0
      %214 = vmatpush.msra.mxu0 0.0
      %215 = vmatpush.msra.mxu0 0.0
      %216 = vmatpush.msra.mxu0 0.0
      %217 = vmatpush.msra.mxu0 0.0
      %218 = vmatpush.msra.mxu0 0.0
      %219 = vmatpush.msra.mxu0 %v204
      %220 = vmatpush.msra.mxu0 %v203
      %221 = vmatmul.f32.gmra.mxu0 %v158
      %v222 = vpop.f32.mrf.mxu0
      %v223 = vadd.f32 0.0, %v222
      %224 = vmatmul.f32.gmra.mxu0 %v161
      %v225 = vpop.f32.mrf.mxu0
      %v226 = vadd.f32 0.0, %v225
      %227 = vmatmul.f32.gmra.mxu0 %v164
      %v228 = vpop.f32.mrf.mxu0
      %v229 = vadd.f32 0.0, %v228
      %230 = vmatmul.f32.gmra.mxu0 %v167
      %v231 = vpop.f32.mrf.mxu0
      %v232 = vadd.f32 0.0, %v231
      %233 = vdwg.mxu0
      %v234 = vmax.f32 %v187, %v223
      %v235 = vmax.f32 %v190, %v226
      %v236 = vmax.f32 %v193, %v229
      %v237 = vmax.f32 %v196, %v232
      %vm238 = vcmask 64512
      %239 = vst.msk [vmem:[%s118] sm:$0xff] %vm238, %v234
      %240 = vst.msk [vmem:[%s118 + $0x8] sm:$0xff] %vm238, %v235
      %241 = vst.msk [vmem:[%s118 + $0x10] sm:$0xff] %vm238, %v236
      %242 = vst.msk [vmem:[%s118 + $0x18] sm:$0xff] %vm238, %v237
      %s243 = smul.u32 4, %s12
      %p244 = scmp.lt.s32.totalorder %s243, 31
      %s245 = scalar_select %p244, %s243, 31
      %s246 = smul.addr %s245, 8
      %s247 = scalar_lea.vmem %s1, %s246
      // Predicated region
      $region25: #{tpu_custom_call.1} parent=23 // pred_check
        %p248 = pneg %p56
      $region26: #{tpu_custom_call.1} parent=23 // pred_check_branch
        %250 = sbr.rel (%p248) target = $region28
      $region27: #{tpu_custom_call.1} parent=23 // pred_region
        %s251 = smul.u32 4, %s12
      $region28: #{tpu_custom_call.1} parent=23 // pred_fallthru
        _
    $region24: #{tpu_custom_call.1} parent=5 // pred_fallthru
      _
    %p252 = scmp.le.s32.totalorder 2, %s7
    // Predicated region
    $region29: #{tpu_custom_call.1} parent=5 // pred_check
      %p253 = pneg %p252
    $region30: #{tpu_custom_call.1} parent=5 // pred_check_branch
      %255 = sbr.rel (%p253) target = $region32
    $region31: #{tpu_custom_call.1} parent=5 // pred_region
      %s256 = ssub.s32 %s7, 2
      // Predicated region
      $region33: #{tpu_custom_call.1} parent=31 // pred_check
        %p257 = pneg %p62
      $region34: #{tpu_custom_call.1} parent=31 // pred_check_branch
        %259 = sbr.rel (%p257) target = $region36
      $region35: #{tpu_custom_call.1} parent=31 // pred_region
        %s260 = smul.u32 4, %s13
        %p261 = scmp.lt.s32.totalorder %s260, 31
        %s262 = scalar_select %p261, %s260, 31
        %s263 = smul.addr %s262, 8
        %s264 = scalar_lea.vmem %s1, %s263
      $region36: #{tpu_custom_call.1} parent=31 // pred_fallthru
        _
    $region32: #{tpu_custom_call.1} parent=5 // pred_fallthru
      _
  $region6: #{tpu_custom_call.1} parent=0 // loop_footer
    %s11 = sadd.s32 1, %s7
  $region7: #{tpu_custom_call.1} parent=0 // loop_footer_branch
    %6 = sbr.rel target = $region3
  $region8: #{tpu_custom_call.1} parent=0 // loop_exit
    _

</llo_original>
